<compile_context>
chip_gen: v7x
topology: tpu7x:2x2x1
jax: 0.10.0
libtpu: 0.0.40
codegen_flags: <defaults>
</compile_context>

<pallas_src>
import functools

import jax
import jax.numpy as jnp
import numpy as np
from jax.experimental import pallas as pl
from jax.experimental.pallas import tpu as pltpu

_LANE = 128
_SUBLANE = 8


def _round_up(n, m):
    return ((n + m - 1) // m) * m


def _gln_kernel(x_ref, m_ref, inv_n_ref, inv_n1_ref, counts_ref,
                gamma_ref, beta_ref, o_ref, *, eps):
    x = x_ref[...]                                    # (TB, Cp) f32
    m = m_ref[...]                                    # (Cp, Gp) f32 one-hot membership

    # Two *independent* per-group reductions (no serial mean -> center -> var chain).
    s1 = jnp.dot(x, m, preferred_element_type=jnp.float32)        # (TB, Gp)
    s2 = jnp.dot(x * x, m, preferred_element_type=jnp.float32)    # (TB, Gp)

    mean_g = s1 * inv_n_ref[...]                                  # (TB, Gp)
    var_g = (s2 - counts_ref[...] * mean_g * mean_g) * inv_n1_ref[...]
    var_g = jnp.maximum(var_g, 0.0)                   # guard f32 rounding -> sqrt(neg)
    # Reciprocal on the tiny per-group array, not per channel.
    inv_g = pl.reciprocal(jnp.sqrt(var_g) + eps, approx=False)    # (TB, Gp)

    # Single expansion matmul (== stats[:, channel_groups]); contract the G axis
    # of M directly so no separate M^T buffer is needed.
    stacked = jnp.concatenate([mean_g, inv_g], axis=0)            # (2*TB, Gp)
    exp = jax.lax.dot_general(stacked, m, (((1,), (1,)), ((), ())),
                              preferred_element_type=jnp.float32)  # (2*TB, Cp)
    tb = x.shape[0]
    mean_c = exp[:tb]
    inv_c = exp[tb:]

    # Fold the affine into the scale: (x - mean)/(std + eps)*gamma + beta.
    y = (x - mean_c) * (inv_c * gamma_ref[...]) + beta_ref[...]
    o_ref[...] = y.astype(o_ref.dtype)


def _choose_batch_tile(B, Cp):
    """Largest sublane-aligned batch tile that keeps double-buffered in+out tiles
    comfortably below the scoped-VMEM default on every chip generation."""
    per_row = 2 * 2 * Cp * 4                  # (in + out) x double-buffer, f32
    budget = 24 << 20                         # < 32 MiB scoped default (v6e/v7x), < v7x 64 MiB phys
    tb = max(_SUBLANE, (budget // per_row) // _SUBLANE * _SUBLANE)
    tb = min(tb, 512)                         # diminishing returns past ~512 rows
    tb = min(tb, _round_up(B, _SUBLANE))      # don't tile past the (padded) batch
    return max(tb, _SUBLANE)


def group_layer_norm(x, channel_groups, gamma, beta, eps=0.1):
    """x: (B, C, 1) float32; channel_groups: int array of length C (group id per channel)."""
    channel_groups = np.asarray(channel_groups, dtype=np.int32)
    B, C, _ = x.shape
    G = int(channel_groups.max()) + 1

    Cp = _round_up(C, _LANE)
    Gp = _round_up(G, _LANE)
    TB = _choose_batch_tile(B, Cp)
    Bp = _round_up(B, TB)

    # ---- host-side glue (static w.r.t. the data) ----
    counts = np.bincount(channel_groups, minlength=G).astype(np.float32)
    counts_p = np.zeros((1, Gp), np.float32)
    counts_p[0, :G] = counts
    inv_n = np.zeros((1, Gp), np.float32)
    inv_n[0, :G] = 1.0 / counts
    inv_n1 = np.zeros((1, Gp), np.float32)
    # Bessel correction: a 1-channel group yields nan (matches torch's unbiased var).
    with np.errstate(divide="ignore"):
        inv_n1[0, :G] = 1.0 / (counts - 1.0)

    m = np.zeros((Cp, Gp), np.float32)
    m[np.arange(C), channel_groups] = 1.0        # padded channels belong to no group

    gamma_np = np.asarray(gamma, np.float32)
    beta_np = np.asarray(beta, np.float32)
    gamma_c = np.zeros((1, Cp), np.float32)
    beta_c = np.zeros((1, Cp), np.float32)
    gamma_c[0, :C] = gamma_np[channel_groups]
    beta_c[0, :C] = beta_np[channel_groups]

    x2 = jnp.zeros((Bp, Cp), jnp.float32).at[:B, :C].set(
        jnp.asarray(x[..., 0], jnp.float32))

    grid = (Bp // TB,)
    out = pl.pallas_call(
        functools.partial(_gln_kernel, eps=float(eps)),
        out_shape=jax.ShapeDtypeStruct((Bp, Cp), jnp.float32),
        grid=grid,
        in_specs=[
            pl.BlockSpec((TB, Cp), lambda i: (i, 0)),   # x: tiled over batch
            pl.BlockSpec((Cp, Gp), lambda i: (0, 0)),   # M: VMEM-resident across steps
            pl.BlockSpec((1, Gp), lambda i: (0, 0)),    # 1/n
            pl.BlockSpec((1, Gp), lambda i: (0, 0)),    # 1/(n-1)
            pl.BlockSpec((1, Gp), lambda i: (0, 0)),    # n
            pl.BlockSpec((1, Cp), lambda i: (0, 0)),    # gamma per channel
            pl.BlockSpec((1, Cp), lambda i: (0, 0)),    # beta per channel
        ],
        out_specs=pl.BlockSpec((TB, Cp), lambda i: (i, 0)),
        compiler_params=pltpu.CompilerParams(
            dimension_semantics=("parallel",),           # batch tiles are independent
            vmem_limit_bytes=48 * 1024 * 1024),
    )(x2, jnp.asarray(m), jnp.asarray(inv_n), jnp.asarray(inv_n1),
      jnp.asarray(counts_p), jnp.asarray(gamma_c), jnp.asarray(beta_c))

    return out[:B, :C][..., None]                                   # (B, C, 1)


def _reference(x, channel_groups, gamma, beta, eps=0.1):
    """Pure-JAX reference mirroring the PyTorch forward."""
    cg = np.asarray(channel_groups)
    G = int(cg.max()) + 1
    xs = x[..., 0]
    n = np.bincount(cg, minlength=G).astype(np.float32)
    mean = jax.ops.segment_sum(xs.T, jnp.asarray(cg), G).T / n[None, :]
    d = xs - mean[:, cg]
    var = jax.ops.segment_sum((d * d).T, jnp.asarray(cg), G).T / (n[None, :] - 1.0)
    std = jnp.sqrt(var)
    y = d / (std[:, cg] + eps)
    y = y * jnp.asarray(gamma)[cg][None, :] + jnp.asarray(beta)[cg][None, :]
    return y[..., None]


if __name__ == "__main__":
    key = jax.random.PRNGKey(0)
    kx, kg, kb = jax.random.split(key, 3)

    # 4 groups of unequal sizes (3, 5, 4, 4) -> C = 16 channels, batch B = 2.
    channel_groups = np.concatenate([np.full(3, 0), np.full(5, 1),
                                     np.full(4, 2), np.full(4, 3)]).astype(np.int32)
    B, C = 2, len(channel_groups)
    G = int(channel_groups.max()) + 1

    x = jax.random.normal(kx, (B, C, 1), dtype=jnp.float32)
    # module init is ones/zeros; perturb deterministically so the affine path is exercised
    gamma = jnp.ones((G,), jnp.float32) + 0.1 * jax.random.normal(kg, (G,))
    beta = 0.1 * jax.random.normal(kb, (G,))

    out = group_layer_norm(x, channel_groups, gamma, beta, eps=0.1)
    out = jax.block_until_ready(out)

    ref = _reference(x, channel_groups, gamma, beta, eps=0.1)
    np.testing.assert_allclose(np.asarray(out), np.asarray(ref), rtol=1e-5, atol=1e-5)

    print("KERNEL_OK")
</pallas_src>

<mosaic_0001>
module attributes {stable_mosaic.version = 11 : i64} {
  func.func @_gln_kernel(%arg0: i32, %arg1: memref<8x128xf32, #tpu.memory_space<vmem>>, %arg2: memref<128x128xf32, #tpu.memory_space<vmem>>, %arg3: memref<1x128xf32, #tpu.memory_space<vmem>>, %arg4: memref<1x128xf32, #tpu.memory_space<vmem>>, %arg5: memref<1x128xf32, #tpu.memory_space<vmem>>, %arg6: memref<1x128xf32, #tpu.memory_space<vmem>>, %arg7: memref<1x128xf32, #tpu.memory_space<vmem>>, %arg8: memref<8x128xf32, #tpu.memory_space<vmem>>) attributes {dimension_semantics = [#tpu.dimension_semantics<parallel>], iteration_bounds = array<i64: 1>, scalar_prefetch = 0 : i64, scratch_operands = 0 : i64, tpu.core_type = #tpu.core_type<tc>, window_params = [{transform_indices = @transform_0, window_bounds = array<i64: 8, 128>}, {pipeline_mode = #tpu.pipeline_mode<synchronous>, transform_indices = @transform_1, window_bounds = array<i64: 128, 128>}, {pipeline_mode = #tpu.pipeline_mode<synchronous>, transform_indices = @transform_2, window_bounds = array<i64: 1, 128>}, {pipeline_mode = #tpu.pipeline_mode<synchronous>, transform_indices = @transform_3, window_bounds = array<i64: 1, 128>}, {pipeline_mode = #tpu.pipeline_mode<synchronous>, transform_indices = @transform_4, window_bounds = array<i64: 1, 128>}, {pipeline_mode = #tpu.pipeline_mode<synchronous>, transform_indices = @transform_5, window_bounds = array<i64: 1, 128>}, {pipeline_mode = #tpu.pipeline_mode<synchronous>, transform_indices = @transform_6, window_bounds = array<i64: 1, 128>}, {transform_indices = @transform_7, window_bounds = array<i64: 8, 128>}]} {
    %c0 = arith.constant 0 : index
    %c0_0 = arith.constant 0 : index
    %0 = vector.load %arg1[%c0, %c0_0] : memref<8x128xf32, #tpu.memory_space<vmem>>, vector<8x128xf32>
    %c0_1 = arith.constant 0 : index
    %c0_2 = arith.constant 0 : index
    %1 = vector.load %arg2[%c0_1, %c0_2] : memref<128x128xf32, #tpu.memory_space<vmem>>, vector<128x128xf32>
    %cst = arith.constant dense<0.000000e+00> : vector<8x128xf32>
    %2 = tpu.matmul %0, %1, %cst {dimension_numbers = #tpu.dot_dimension_numbers<[1], [0], [0], [1], [0, 0, 1, 1], [], []>} : vector<8x128xf32>, vector<128x128xf32>, vector<8x128xf32> -> vector<8x128xf32>
    %3 = arith.mulf %0, %0 : vector<8x128xf32>
    %cst_3 = arith.constant dense<0.000000e+00> : vector<8x128xf32>
    %4 = tpu.matmul %3, %1, %cst_3 {dimension_numbers = #tpu.dot_dimension_numbers<[1], [0], [0], [1], [0, 0, 1, 1], [], []>} : vector<8x128xf32>, vector<128x128xf32>, vector<8x128xf32> -> vector<8x128xf32>
    %c0_4 = arith.constant 0 : index
    %c0_5 = arith.constant 0 : index
    %5 = vector.load %arg3[%c0_4, %c0_5] : memref<1x128xf32, #tpu.memory_space<vmem>>, vector<1x128xf32>
    %6 = vector.broadcast %5 : vector<1x128xf32> to vector<8x128xf32>
    %7 = arith.mulf %2, %6 : vector<8x128xf32>
    %c0_6 = arith.constant 0 : index
    %c0_7 = arith.constant 0 : index
    %8 = vector.load %arg5[%c0_6, %c0_7] : memref<1x128xf32, #tpu.memory_space<vmem>>, vector<1x128xf32>
    %9 = vector.broadcast %8 : vector<1x128xf32> to vector<8x128xf32>
    %10 = arith.mulf %9, %7 : vector<8x128xf32>
    %11 = arith.mulf %10, %7 : vector<8x128xf32>
    %12 = arith.subf %4, %11 : vector<8x128xf32>
    %c0_8 = arith.constant 0 : index
    %c0_9 = arith.constant 0 : index
    %13 = vector.load %arg4[%c0_8, %c0_9] : memref<1x128xf32, #tpu.memory_space<vmem>>, vector<1x128xf32>
    %14 = vector.broadcast %13 : vector<1x128xf32> to vector<8x128xf32>
    %15 = arith.mulf %12, %14 : vector<8x128xf32>
    %cst_10 = arith.constant 0.000000e+00 : f32
    %16 = vector.broadcast %cst_10 : f32 to vector<8x128xf32>
    %17 = arith.maximumf %15, %16 : vector<8x128xf32>
    %18 = math.sqrt %17 : vector<8x128xf32>
    %cst_11 = arith.constant 1.000000e-01 : f32
    %19 = vector.broadcast %cst_11 : f32 to vector<8x128xf32>
    %20 = arith.addf %18, %19 : vector<8x128xf32>
    %21 = tpu.reciprocal %20 : vector<8x128xf32> -> vector<8x128xf32>
    %22 = tpu.concatenate %7, %21 in 0 : vector<8x128xf32>, vector<8x128xf32> -> vector<16x128xf32>
    %cst_12 = arith.constant dense<0.000000e+00> : vector<16x128xf32>
    %23 = tpu.matmul %22, %1, %cst_12 {dimension_numbers = #tpu.dot_dimension_numbers<[1], [1], [0], [0], [0, 0, 1, 0], [], []>} : vector<16x128xf32>, vector<128x128xf32>, vector<16x128xf32> -> vector<16x128xf32>
    %24 = vector.extract_strided_slice %23 {offsets = [0, 0], sizes = [8, 128], strides = [1, 1]} : vector<16x128xf32> to vector<8x128xf32>
    %25 = vector.extract_strided_slice %23 {offsets = [8, 0], sizes = [8, 128], strides = [1, 1]} : vector<16x128xf32> to vector<8x128xf32>
    %26 = arith.subf %0, %24 : vector<8x128xf32>
    %c0_13 = arith.constant 0 : index
    %c0_14 = arith.constant 0 : index
    %27 = vector.load %arg6[%c0_13, %c0_14] : memref<1x128xf32, #tpu.memory_space<vmem>>, vector<1x128xf32>
    %28 = vector.broadcast %27 : vector<1x128xf32> to vector<8x128xf32>
    %29 = arith.mulf %25, %28 : vector<8x128xf32>
    %30 = arith.mulf %26, %29 : vector<8x128xf32>
    %c0_15 = arith.constant 0 : index
    %c0_16 = arith.constant 0 : index
    %31 = vector.load %arg7[%c0_15, %c0_16] : memref<1x128xf32, #tpu.memory_space<vmem>>, vector<1x128xf32>
    %32 = vector.broadcast %31 : vector<1x128xf32> to vector<8x128xf32>
    %33 = arith.addf %30, %32 : vector<8x128xf32>
    %c0_17 = arith.constant 0 : index
    %c0_18 = arith.constant 0 : index
    %34 = vector.load %arg8[%c0_17, %c0_18] : memref<8x128xf32, #tpu.memory_space<vmem>>, vector<8x128xf32>
    tpu.vector_store %arg8[%c0_17, %c0_18], %33 {strides = array<i32>} : memref<8x128xf32, #tpu.memory_space<vmem>>, vector<8x128xf32>,
    return
  }
  func.func @transform_0(%arg0: i32) -> (i32, i32) {
    %c0_i32 = arith.constant 0 : i32
    %c0_i32_0 = arith.constant 0 : i32
    return %arg0, %c0_i32 : i32, i32
  }
  func.func @transform_1(%arg0: i32) -> (i32, i32) {
    %c0_i32 = arith.constant 0 : i32
    %c0_i32_0 = arith.constant 0 : i32
    %c0_i32_1 = arith.constant 0 : i32
    return %c0_i32, %c0_i32_0 : i32, i32
  }
  func.func @transform_2(%arg0: i32) -> (i32, i32) {
    %c0_i32 = arith.constant 0 : i32
    %c0_i32_0 = arith.constant 0 : i32
    %c0_i32_1 = arith.constant 0 : i32
    return %c0_i32, %c0_i32_0 : i32, i32
  }
  func.func @transform_3(%arg0: i32) -> (i32, i32) {
    %c0_i32 = arith.constant 0 : i32
    %c0_i32_0 = arith.constant 0 : i32
    %c0_i32_1 = arith.constant 0 : i32
    return %c0_i32, %c0_i32_0 : i32, i32
  }
  func.func @transform_4(%arg0: i32) -> (i32, i32) {
    %c0_i32 = arith.constant 0 : i32
    %c0_i32_0 = arith.constant 0 : i32
    %c0_i32_1 = arith.constant 0 : i32
    return %c0_i32, %c0_i32_0 : i32, i32
  }
  func.func @transform_5(%arg0: i32) -> (i32, i32) {
    %c0_i32 = arith.constant 0 : i32
    %c0_i32_0 = arith.constant 0 : i32
    %c0_i32_1 = arith.constant 0 : i32
    return %c0_i32, %c0_i32_0 : i32, i32
  }
  func.func @transform_6(%arg0: i32) -> (i32, i32) {
    %c0_i32 = arith.constant 0 : i32
    %c0_i32_0 = arith.constant 0 : i32
    %c0_i32_1 = arith.constant 0 : i32
    return %c0_i32, %c0_i32_0 : i32, i32
  }
  func.func @transform_7(%arg0: i32) -> (i32, i32) {
    %c0_i32 = arith.constant 0 : i32
    %c0_i32_0 = arith.constant 0 : i32
    return %arg0, %c0_i32 : i32, i32
  }
}

</mosaic_0001>

<llo_original>
// kernel: tpu_custom_call.1
$region0: #{tpu_custom_call.1}
  #allocation0 [shape = 'u32[]', space=smem, size = 0x4, offset = 0x4, fixed_abs, tag = 'smem constant byte address 0x4 - core index']
  #allocation1 [shape = 'u32[144,128]{1,0:T(1,128)}', space=vmem, size = 0x12000, scoped, tag = 'internal scratch']
  %s0 = inlined_call_operand.hbm [shape: f32[8,128], index: 0, kind: input, shape index: {}]
  %s1 = inlined_call_operand.hbm [shape: f32[128,128], index: 1, kind: input, shape index: {}]
  %s2 = inlined_call_operand.vmem [shape: f32[1,128], index: 2, kind: input, shape index: {}]
  %s3 = inlined_call_operand.vmem [shape: f32[1,128], index: 3, kind: input, shape index: {}]
  %s4 = inlined_call_operand.vmem [shape: f32[1,128], index: 4, kind: input, shape index: {}]
  %s5 = inlined_call_operand.vmem [shape: f32[1,128], index: 5, kind: input, shape index: {}]
  %s6 = inlined_call_operand.vmem [shape: f32[1,128], index: 6, kind: input, shape index: {}]
  %s7 = inlined_call_operand.hbm [shape: f32[8,128], index: 7, kind: output, shape index: {}]
  %s8 = sld [smem:[#allocation0]]
  $region46: #{tpu_custom_call.1} parent=0
    _
  %s10 = ssub.s32 1, %s8
  %s11 = scalar_select 0, %s10, %s8
  $region1: #{tpu_custom_call.1} parent=0
    #allocation2 [shape = 'u8[4096]{0}', space=vmem, size = 0x1000, scoped, tag = 'input window, operand 0, single buffered']
    #allocation3 [shape = 's32[1]{0}', space=sflag, size = 0x4, scoped, tag = 'scoped memory for tpu_custom_call.1']
    #allocation4 [shape = 's32[1]{0}', space=sflag, size = 0x4, scoped, tag = 'scoped memory for tpu_custom_call.1']
    #allocation5 [shape = 'u8[65536]{0}', space=vmem, size = 0x10000, scoped, tag = 'input window, operand 1, single buffered']
    #allocation6 [shape = 's32[1]{0}', space=sflag, size = 0x4, scoped, tag = 'scoped memory for tpu_custom_call.1']
    #allocation7 [shape = 'u8[4096]{0}', space=vmem, size = 0x1000, scoped, tag = 'output window, operand 0, single buffered']
    %12 = vsyncpa [#allocation3], 0
    %13 = vsyncpa [#allocation6], 0
    %14 = vsyncpa [#allocation4], 0
    // Predicated region
    $region2: #{tpu_custom_call.1} parent=1 // pred_check
      _
    $region3: #{tpu_custom_call.1} parent=1 // pred_check_branch
      %16 = sbr.rel (0) target = $region5
    $region4: #{tpu_custom_call.1} parent=1 // pred_region
      %s18 = ssub.s32 128, 128
      %19 = vsyncadd [#allocation3], %s18
      %s21 = sshll.u32 [#allocation2], 4
      %s22 = int_to_ptr.vmem [resolvable:$true] %s21
      %24 = dma.hbm_to_vmem [thread:$0]  %s0, 128, %s22, [#allocation3]
    $region5: #{tpu_custom_call.1} parent=1 // pred_fallthru
      _
    // Predicated region
    $region6: #{tpu_custom_call.1} parent=1 // pred_check
      _
    $region7: #{tpu_custom_call.1} parent=1 // pred_check_branch
      %26 = sbr.rel (0) target = $region9
    $region8: #{tpu_custom_call.1} parent=1 // pred_region
      %s28 = ssub.s32 2048, 2048
      %29 = vsyncadd [#allocation6], %s28
      %s30 = sshll.u32 [#allocation5], 4
      %s31 = int_to_ptr.vmem [resolvable:$true] %s30
      %36 = dma.hbm_to_vmem [thread:$0]  %s1, 2048, %s31, [#allocation6], 128, 128, 8
    $region9: #{tpu_custom_call.1} parent=1 // pred_fallthru
      _
    // Predicated region
    $region10: #{tpu_custom_call.1} parent=1 // pred_check
      _
    $region11: #{tpu_custom_call.1} parent=1 // pred_check_branch
      %38 = sbr.rel (0) target = $region13
    $region12: #{tpu_custom_call.1} parent=1 // pred_region
      _
    $region13: #{tpu_custom_call.1} parent=1 // pred_fallthru
      _
    // Predicated region
    $region14: #{tpu_custom_call.1} parent=1 // pred_check
      _
    $region15: #{tpu_custom_call.1} parent=1 // pred_check_branch
      %40 = sbr.rel (0) target = $region17
    $region16: #{tpu_custom_call.1} parent=1 // pred_region
      _
    $region17: #{tpu_custom_call.1} parent=1 // pred_fallthru
      _
    // Predicated region
    $region18: #{tpu_custom_call.1} parent=1 // pred_check
      _
    $region19: #{tpu_custom_call.1} parent=1 // pred_check_branch
      %42 = sbr.rel (0) target = $region21
    $region20: #{tpu_custom_call.1} parent=1 // pred_region
      _
    $region21: #{tpu_custom_call.1} parent=1 // pred_fallthru
      _
    // Predicated region
    $region22: #{tpu_custom_call.1} parent=1 // pred_check
      _
    $region23: #{tpu_custom_call.1} parent=1 // pred_check_branch
      %44 = sbr.rel (0) target = $region25
    $region24: #{tpu_custom_call.1} parent=1 // pred_region
      _
    $region25: #{tpu_custom_call.1} parent=1 // pred_fallthru
      _
    // Predicated region
    $region26: #{tpu_custom_call.1} parent=1 // pred_check
      _
    $region27: #{tpu_custom_call.1} parent=1 // pred_check_branch
      %46 = sbr.rel (0) target = $region29
    $region28: #{tpu_custom_call.1} parent=1 // pred_region
      _
    $region29: #{tpu_custom_call.1} parent=1 // pred_fallthru
      _
    // Predicated region
    $region30: #{tpu_custom_call.1} parent=1 // pred_check
      _
    $region31: #{tpu_custom_call.1} parent=1 // pred_check_branch
      %48 = sbr.rel (0) target = $region33
    $region32: #{tpu_custom_call.1} parent=1 // pred_region
      %49 = dma.done [#allocation3], 128
    $region33: #{tpu_custom_call.1} parent=1 // pred_fallthru
      _
    // Predicated region
    $region34: #{tpu_custom_call.1} parent=1 // pred_check
      _
    $region35: #{tpu_custom_call.1} parent=1 // pred_check_branch
      %51 = sbr.rel (0) target = $region37
    $region36: #{tpu_custom_call.1} parent=1 // pred_region
      %52 = dma.done [#allocation6], 2048
    $region37: #{tpu_custom_call.1} parent=1 // pred_fallthru
      _
    %v53 = vld [vmem:[#allocation2] sm:$0xff]
    %v54 = vld [vmem:[#allocation5] sm:$0xff]
    %v55 = vld [vmem:[#allocation5 + $0x8] sm:$0xff]
    %v56 = vld [vmem:[#allocation5 + $0x10] sm:$0xff]
    %v57 = vld [vmem:[#allocation5 + $0x18] sm:$0xff]
    %v58 = vld [vmem:[#allocation5 + $0x20] sm:$0xff]
    %v59 = vld [vmem:[#allocation5 + $0x28] sm:$0xff]
    %v60 = vld [vmem:[#allocation5 + $0x30] sm:$0xff]
    %v61 = vld [vmem:[#allocation5 + $0x38] sm:$0xff]
    %v62 = vld [vmem:[#allocation5 + $0x40] sm:$0xff]
    %v63 = vld [vmem:[#allocation5 + $0x48] sm:$0xff]
    %v64 = vld [vmem:[#allocation5 + $0x50] sm:$0xff]
    %v65 = vld [vmem:[#allocation5 + $0x58] sm:$0xff]
    %v66 = vld [vmem:[#allocation5 + $0x60] sm:$0xff]
    %v67 = vld [vmem:[#allocation5 + $0x68] sm:$0xff]
    %v68 = vld [vmem:[#allocation5 + $0x70] sm:$0xff]
    %v69 = vld [vmem:[#allocation5 + $0x78] sm:$0xff]
    %70 = vmatprep.subr.mxu0 0.0
    %71 = vmatpush1.msra.mxu0 %v54
    %72 = vmatprep.subr.mxu0 0.0
    %73 = vmatpush1.msra.mxu0 %v55
    %74 = vmatprep.subr.mxu0 0.0
    %75 = vmatpush1.msra.mxu0 %v56
    %76 = vmatprep.subr.mxu0 0.0
    %77 = vmatpush1.msra.mxu0 %v57
    %78 = vmatprep.subr.mxu0 0.0
    %79 = vmatpush1.msra.mxu0 %v58
    %80 = vmatprep.subr.mxu0 0.0
    %81 = vmatpush1.msra.mxu0 %v59
    %82 = vmatprep.subr.mxu0 0.0
    %83 = vmatpush1.msra.mxu0 %v60
    %84 = vmatprep.subr.mxu0 0.0
    %85 = vmatpush1.msra.mxu0 %v61
    %86 = vmatprep.subr.mxu0 0.0
    %87 = vmatpush1.msra.mxu0 %v62
    %88 = vmatprep.subr.mxu0 0.0
    %89 = vmatpush1.msra.mxu0 %v63
    %90 = vmatprep.subr.mxu0 0.0
    %91 = vmatpush1.msra.mxu0 %v64
    %92 = vmatprep.subr.mxu0 0.0
    %93 = vmatpush1.msra.mxu0 %v65
    %94 = vmatprep.subr.mxu0 0.0
    %95 = vmatpush1.msra.mxu0 %v66
    %96 = vmatprep.subr.mxu0 0.0
    %97 = vmatpush1.msra.mxu0 %v67
    %98 = vmatprep.subr.mxu0 0.0
    %99 = vmatpush1.msra.mxu0 %v68
    %100 = vmatprep.subr.mxu0 0.0
    %101 = vmatpush1.msra.mxu0 %v69
    %102 = vmatprep.subr.mxu0 0.0
    %103 = vmatpush1.msra.mxu0 0.0
    %104 = vmatprep.subr.mxu0 0.0
    %105 = vmatpush1.msra.mxu0 0.0
    %106 = vmatprep.subr.mxu0 0.0
    %107 = vmatpush1.msra.mxu0 0.0
    %108 = vmatprep.subr.mxu0 0.0
    %109 = vmatpush1.msra.mxu0 0.0
    %110 = vmatprep.subr.mxu0 0.0
    %111 = vmatpush1.msra.mxu0 0.0
    %112 = vmatprep.subr.mxu0 0.0
    %113 = vmatpush1.msra.mxu0 0.0
    %114 = vmatprep.subr.mxu0 0.0
    %115 = vmatpush1.msra.mxu0 0.0
    %116 = vmatprep.subr.mxu0 0.0
    %117 = vmatpush1.msra.mxu0 0.0
    %118 = vmatprep.subr.mxu0 0.0
    %119 = vmatpush1.msra.mxu0 0.0
    %120 = vmatprep.subr.mxu0 0.0
    %121 = vmatpush1.msra.mxu0 0.0
    %122 = vmatprep.subr.mxu0 0.0
    %123 = vmatpush1.msra.mxu0 0.0
    %124 = vmatprep.subr.mxu0 0.0
    %125 = vmatpush1.msra.mxu0 0.0
    %126 = vmatprep.subr.mxu0 0.0
    %127 = vmatpush1.msra.mxu0 0.0
    %128 = vmatprep.subr.mxu0 0.0
    %129 = vmatpush1.msra.mxu0 0.0
    %130 = vmatprep.subr.mxu0 0.0
    %131 = vmatpush1.msra.mxu0 0.0
    %132 = vmatprep.subr.mxu0 0.0
    %133 = vmatpush1.msra.mxu0 0.0
    %134 = vmatprep.mubr.f32.mxu0 0.0
    %135 = vmatmul.mubr.f32.gmra.mrb[0].mxu0 %v53
    %v136 = vpop.f32.mrb[0].mxu0
    %v137 = vadd.f32 0.0, %v136
    %v138 = vpop.f32.mrb[0].mxu0
    %139 = vdwg.mxu0
    %v140 = vmul.f32 %v53, %v53
    %141 = vmatprep.subr.mxu0 0.0
    %142 = vmatpush1.msra.mxu0 %v54
    %143 = vmatprep.subr.mxu0 0.0
    %144 = vmatpush1.msra.mxu0 %v55
    %145 = vmatprep.subr.mxu0 0.0
    %146 = vmatpush1.msra.mxu0 %v56
    %147 = vmatprep.subr.mxu0 0.0
    %148 = vmatpush1.msra.mxu0 %v57
    %149 = vmatprep.subr.mxu0 0.0
    %150 = vmatpush1.msra.mxu0 %v58
    %151 = vmatprep.subr.mxu0 0.0
    %152 = vmatpush1.msra.mxu0 %v59
    %153 = vmatprep.subr.mxu0 0.0
    %154 = vmatpush1.msra.mxu0 %v60
    %155 = vmatprep.subr.mxu0 0.0
    %156 = vmatpush1.msra.mxu0 %v61
    %157 = vmatprep.subr.mxu0 0.0
    %158 = vmatpush1.msra.mxu0 %v62
    %159 = vmatprep.subr.mxu0 0.0
    %160 = vmatpush1.msra.mxu0 %v63
    %161 = vmatprep.subr.mxu0 0.0
    %162 = vmatpush1.msra.mxu0 %v64
    %163 = vmatprep.subr.mxu0 0.0
    %164 = vmatpush1.msra.mxu0 %v65
    %165 = vmatprep.subr.mxu0 0.0
    %166 = vmatpush1.msra.mxu0 %v66
    %167 = vmatprep.subr.mxu0 0.0
    %168 = vmatpush1.msra.mxu0 %v67
    %169 = vmatprep.subr.mxu0 0.0
    %170 = vmatpush1.msra.mxu0 %v68
    %171 = vmatprep.subr.mxu0 0.0
    %172 = vmatpush1.msra.mxu0 %v69
    %173 = vmatprep.subr.mxu0 0.0
    %174 = vmatpush1.msra.mxu0 0.0
    %175 = vmatprep.subr.mxu0 0.0
    %176 = vmatpush1.msra.mxu0 0.0
    %177 = vmatprep.subr.mxu0 0.0
    %178 = vmatpush1.msra.mxu0 0.0
    %179 = vmatprep.subr.mxu0 0.0
    %180 = vmatpush1.msra.mxu0 0.0
    %181 = vmatprep.subr.mxu0 0.0
    %182 = vmatpush1.msra.mxu0 0.0
    %183 = vmatprep.subr.mxu0 0.0
    %184 = vmatpush1.msra.mxu0 0.0
    %185 = vmatprep.subr.mxu0 0.0
    %186 = vmatpush1.msra.mxu0 0.0
    %187 = vmatprep.subr.mxu0 0.0
    %188 = vmatpush1.msra.mxu0 0.0
    %189 = vmatprep.subr.mxu0 0.0
    %190 = vmatpush1.msra.mxu0 0.0
    %191 = vmatprep.subr.mxu0 0.0
    %192 = vmatpush1.msra.mxu0 0.0
    %193 = vmatprep.subr.mxu0 0.0
    %194 = vmatpush1.msra.mxu0 0.0
    %195 = vmatprep.subr.mxu0 0.0
    %196 = vmatpush1.msra.mxu0 0.0
    %197 = vmatprep.subr.mxu0 0.0
    %198 = vmatpush1.msra.mxu0 0.0
    %199 = vmatprep.subr.mxu0 0.0
    %200 = vmatpush1.msra.mxu0 0.0
    %201 = vmatprep.subr.mxu0 0.0
    %202 = vmatpush1.msra.mxu0 0.0
    %203 = vmatprep.subr.mxu0 0.0
    %204 = vmatpush1.msra.mxu0 0.0
    %205 = vmatprep.mubr.f32.mxu0 0.0
    %206 = vmatmul.mubr.f32.gmra.mrb[0].mxu0 %v140
    %v207 = vpop.f32.mrb[0].mxu0
    %v208 = vadd.f32 0.0, %v207
    %v209 = vpop.f32.mrb[0].mxu0
    %210 = vdwg.mxu0
    %v211 = vld [vmem:[%s2] sm:$0x1]
    %v213 = vlaneseq
    %v214 = vshrl.u32 %v213, 7
    %v215 = vsub.s32 0, %v214
    %v216 = vrot.slane %v211, %v215
    %v218 = vmul.f32 %v137, %v216
    %v219 = vld [vmem:[%s4] sm:$0x1]
    %v221 = vlaneseq
    %v222 = vshrl.u32 %v221, 7
    %v223 = vsub.s32 0, %v222
    %v224 = vrot.slane %v219, %v223
    %v226 = vmul.f32 %v224, %v218
    %v227 = vmul.f32 %v226, %v218
    %v228 = vsub.f32 %v208, %v227
    %v229 = vld [vmem:[%s3] sm:$0x1]
    %v231 = vlaneseq
    %v232 = vshrl.u32 %v231, 7
    %v233 = vsub.s32 0, %v232
    %v234 = vrot.slane %v229, %v233
    %v236 = vmul.f32 %v228, %v234
    %v237 = vmax.f32 %v236, 0.0
    %v238 = vrsqrt.pop %v237
    %v239 = vmul.f32 %v237, %v238
    %vm240 = vcmp.eq.f32.partialorder %v237, inf
    %v241 = vsel %vm240, %v237, %v239
    %vm242 = vcmp.eq.f32.partialorder %v237, 0.0
    %v243 = vand.u32 %v237, 2147483648
    %v244 = vsel %vm242, %v243, %v241
    %v245 = vadd.f32 %v244, 0.1
    %v246 = vrcp.pop %v245
    %247 = vmatprep.subr.mxu0 0.0
    %248 = vmatpush1.xpose.msra.mxu0 %v54
    %249 = vmatprep.subr.mxu0 0.0
    %250 = vmatpush1.xpose.msra.mxu0 %v55
    %251 = vmatprep.subr.mxu0 0.0
    %252 = vmatpush1.xpose.msra.mxu0 %v56
    %253 = vmatprep.subr.mxu0 0.0
    %254 = vmatpush1.xpose.msra.mxu0 %v57
    %255 = vmatprep.subr.mxu0 0.0
    %256 = vmatpush1.xpose.msra.mxu0 %v58
    %257 = vmatprep.subr.mxu0 0.0
    %258 = vmatpush1.xpose.msra.mxu0 %v59
    %259 = vmatprep.subr.mxu0 0.0
    %260 = vmatpush1.xpose.msra.mxu0 %v60
    %261 = vmatprep.subr.mxu0 0.0
    %262 = vmatpush1.xpose.msra.mxu0 %v61
    %263 = vmatprep.subr.mxu0 0.0
    %264 = vmatpush1.xpose.msra.mxu0 %v62
    %265 = vmatprep.subr.mxu0 0.0
    %266 = vmatpush1.xpose.msra.mxu0 %v63
    %267 = vmatprep.subr.mxu0 0.0
    %268 = vmatpush1.xpose.msra.mxu0 %v64
    %269 = vmatprep.subr.mxu0 0.0
    %270 = vmatpush1.xpose.msra.mxu0 %v65
    %271 = vmatprep.subr.mxu0 0.0
    %272 = vmatpush1.xpose.msra.mxu0 %v66
    %273 = vmatprep.subr.mxu0 0.0
    %274 = vmatpush1.xpose.msra.mxu0 %v67
    %275 = vmatprep.subr.mxu0 0.0
    %276 = vmatpush1.xpose.msra.mxu0 %v68
    %277 = vmatprep.subr.mxu0 0.0
    %278 = vmatpush1.xpose.msra.mxu0 %v69
    %279 = vmatprep.subr.mxu0 0.0
    %280 = vmatpush1.xpose.msra.mxu0 0.0
    %281 = vmatprep.subr.mxu0 0.0
    %282 = vmatpush1.xpose.msra.mxu0 0.0
    %283 = vmatprep.subr.mxu0 0.0
    %284 = vmatpush1.xpose.msra.mxu0 0.0
    %285 = vmatprep.subr.mxu0 0.0
    %286 = vmatpush1.xpose.msra.mxu0 0.0
    %287 = vmatprep.subr.mxu0 0.0
    %288 = vmatpush1.xpose.msra.mxu0 0.0
    %289 = vmatprep.subr.mxu0 0.0
    %290 = vmatpush1.xpose.msra.mxu0 0.0
    %291 = vmatprep.subr.mxu0 0.0
    %292 = vmatpush1.xpose.msra.mxu0 0.0
    %293 = vmatprep.subr.mxu0 0.0
    %294 = vmatpush1.xpose.msra.mxu0 0.0
    %295 = vmatprep.subr.mxu0 0.0
    %296 = vmatpush1.xpose.msra.mxu0 0.0
    %297 = vmatprep.subr.mxu0 0.0
    %298 = vmatpush1.xpose.msra.mxu0 0.0
    %299 = vmatprep.subr.mxu0 0.0
    %300 = vmatpush1.xpose.msra.mxu0 0.0
    %301 = vmatprep.subr.mxu0 0.0
    %302 = vmatpush1.xpose.msra.mxu0 0.0
    %303 = vmatprep.subr.mxu0 0.0
    %304 = vmatpush1.xpose.msra.mxu0 0.0
    %305 = vmatprep.subr.mxu0 0.0
    %306 = vmatpush1.xpose.msra.mxu0 0.0
    %307 = vmatprep.subr.mxu0 0.0
    %308 = vmatpush1.xpose.msra.mxu0 0.0
    %309 = vmatprep.subr.mxu0 0.0
    %310 = vmatpush1.xpose.msra.mxu0 0.0
    %311 = vmatprep.mubr.f32.mxu0 0.0
    %312 = vmatmul.mubr.f32.gmra.mrb[0].mxu0 %v218
    %v313 = vpop.f32.mrb[0].mxu0
    %v314 = vadd.f32 0.0, %v313
    %v315 = vpop.f32.mrb[0].mxu0
    %316 = vmatprep.mubr.f32.mxu0 0.0
    %317 = vmatmul.mubr.f32.gmra.mrb[0].mxu0 %v246
    %v318 = vpop.f32.mrb[0].mxu0
    %v319 = vadd.f32 0.0, %v318
    %v320 = vpop.f32.mrb[0].mxu0
    %321 = vdwg.mxu0
    %v322 = vsub.f32 %v53, %v314
    %v323 = vld [vmem:[%s5] sm:$0x1]
    %v325 = vlaneseq
    %v326 = vshrl.u32 %v325, 7
    %v327 = vsub.s32 0, %v326
    %v328 = vrot.slane %v323, %v327
    %v330 = vmul.f32 %v319, %v328
    %v331 = vmul.f32 %v322, %v330
    %v332 = vld [vmem:[%s6] sm:$0x1]
    %v334 = vlaneseq
    %v335 = vshrl.u32 %v334, 7
    %v336 = vsub.s32 0, %v335
    %v337 = vrot.slane %v332, %v336
    %v339 = vadd.f32 %v331, %v337
    %340 = vst [vmem:[#allocation7] sm:$0xff] %v339
    // Predicated region
    $region38: #{tpu_custom_call.1} parent=1 // pred_check
      _
    $region39: #{tpu_custom_call.1} parent=1 // pred_check_branch
      %342 = sbr.rel (0) target = $region41
    $region40: #{tpu_custom_call.1} parent=1 // pred_region
      %s344 = ssub.s32 128, 128
      %345 = vsyncadd [#allocation4], %s344
      %s347 = sshll.u32 [#allocation7], 4
      %s348 = int_to_ptr.vmem [resolvable:$true] %s347
      %350 = dma.vmem_to_hbm [thread:$0]  %s348, 128, %s7, [#allocation4]
    $region41: #{tpu_custom_call.1} parent=1 // pred_fallthru
      _
    // Predicated region
    $region42: #{tpu_custom_call.1} parent=1 // pred_check
      _
    $region43: #{tpu_custom_call.1} parent=1 // pred_check_branch
      %352 = sbr.rel (0) target = $region45
    $region44: #{tpu_custom_call.1} parent=1 // pred_region
      %353 = dma.done [#allocation4], 128
    $region45: #{tpu_custom_call.1} parent=1 // pred_fallthru
      _
    %354 = vsyncpa [#allocation3], 1
    %355 = vsyncpa [#allocation6], 1
    %356 = vsyncpa [#allocation4], 1

</llo_original>
